<compile_context>
chip_gen: v5e
topology: v5e:2x2
jax: 0.10.0
libtpu: 0.0.40
codegen_flags: <defaults>
</compile_context>

<pallas_src>
import functools

import jax
import jax.numpy as jnp
from jax.experimental import pallas as pl
from jax.experimental.pallas import tpu as pltpu


def _make_dma_identity_kernel(n_chunks):
    """Build an HBM->HBM copy kernel issuing `n_chunks` async DMAs."""

    def kernel(x_hbm, o_hbm, sem):
        if x_hbm.shape and n_chunks > 1:
            rows = x_hbm.shape[0]
            chunk = rows // n_chunks  # wrapper guarantees rows % n_chunks == 0
            copies = []
            for c in range(n_chunks):
                start = c * chunk
                cp = pltpu.make_async_copy(
                    x_hbm.at[pl.ds(start, chunk)],
                    o_hbm.at[pl.ds(start, chunk)],
                    sem.at[c],
                )
                cp.start()
                copies.append(cp)
            for cp in copies:
                cp.wait()
        else:
            # Whole-array copy in one DMA (arbitrary shape/dtype, incl. 0-d).
            cp = pltpu.make_async_copy(x_hbm, o_hbm, sem.at[0])
            cp.start()
            cp.wait()

    return kernel


@functools.partial(jax.jit, static_argnames=("n_chunks",))
def _pallas_identity_copy(x, *, n_chunks):
    return pl.pallas_call(
        _make_dma_identity_kernel(n_chunks),
        out_shape=jax.ShapeDtypeStruct(x.shape, x.dtype),
        in_specs=[pl.BlockSpec(memory_space=pl.ANY)],   # raw HBM ref, no auto-DMA
        out_specs=pl.BlockSpec(memory_space=pl.ANY),    # result stays in HBM
        scratch_shapes=[pltpu.SemaphoreType.DMA((n_chunks,))],
    )(x)


def _pick_n_chunks(x, max_chunks=8):
    """Split the leading axis into a few DMAs, but never below ~1 MiB/chunk."""
    if x.ndim == 0:
        return 1
    lead = int(x.shape[0])
    if lead <= 1:
        return 1
    nbytes = x.size * jnp.dtype(x.dtype).itemsize
    for c in range(min(max_chunks, lead), 1, -1):
        if lead % c == 0 and nbytes // c >= (1 << 20):
            return c
    return 1


def identity_forward(x, *, materialize=False):
    """Identity forward: y = x.

    Default (materialize=False): return x itself — zero data movement, the true
    optimum for nn.Identity.

    materialize=True: return a freshly materialized buffer with identical
    contents, produced by a gridless Pallas kernel that performs a direct
    HBM->HBM DMA copy (no VMEM tiling, no aliasing, no defensive copies).
    """
    if not materialize:
        return x
    if x.size == 0:
        return x
    return _pallas_identity_copy(x, n_chunks=_pick_n_chunks(x))


if __name__ == "__main__":
    key = jax.random.PRNGKey(0)
    k1, k2, k3 = jax.random.split(key, 3)

    # Small NCHW input matching the module's typical use: batch=2, channels=4, 16x16.
    x_small = jax.random.normal(k1, (2, 4, 16, 16), dtype=jnp.float32)

    # Default path: pure passthrough (the real nn.Identity semantics).
    y_pass = identity_forward(x_small)
    jax.block_until_ready(y_pass)
    assert y_pass.shape == x_small.shape and y_pass.dtype == x_small.dtype
    assert jnp.array_equal(y_pass, x_small)

    # Force the Pallas DMA-copy kernel so the kernel path is exercised on TPU.
    y_small = identity_forward(x_small, materialize=True)
    jax.block_until_ready(y_small)
    assert y_small.shape == x_small.shape and y_small.dtype == x_small.dtype
    assert jnp.array_equal(y_small, x_small)

    # Slightly larger f32 tensor: exercises the chunked multi-DMA path (2 chunks).
    x_f32 = jax.random.normal(k2, (4, 8, 128, 128), dtype=jnp.float32)
    y_f32 = identity_forward(x_f32, materialize=True)
    jax.block_until_ready(y_f32)
    assert jnp.array_equal(y_f32, x_f32)

    # bf16 tensor: dtype-agnostic DMA copy.
    x_bf16 = jax.random.normal(k3, (2, 8, 64, 64), dtype=jnp.bfloat16)
    y_bf16 = identity_forward(x_bf16, materialize=True)
    jax.block_until_ready(y_bf16)
    assert jnp.array_equal(y_bf16, x_bf16)

    # Oddly-shaped tensor: single whole-ref DMA, still exact identity.
    x_odd = jax.random.normal(k1, (3, 5, 7), dtype=jnp.float32)
    y_odd = identity_forward(x_odd, materialize=True)
    jax.block_until_ready(y_odd)
    assert jnp.array_equal(y_odd, x_odd)

    print("KERNEL_OK")
</pallas_src>

<mosaic_0001>
module attributes {stable_mosaic.version = 11 : i64} {
  func.func @kernel(%arg0: memref<2x4x16x16xf32, #tpu.memory_space<any>>, %arg1: memref<2x4x16x16xf32, #tpu.memory_space<any>>, %arg2: memref<1x!tpu.dma_semaphore, #tpu.memory_space<semaphore_mem>>) attributes {dimension_semantics = [], scalar_prefetch = 0 : i64, scratch_operands = 1 : i64, tpu.core_type = #tpu.core_type<tc>} {
    %c0_i32 = arith.constant 0 : i32
    %0 = tpu.memref_slice %arg2[%c0_i32] : memref<1x!tpu.dma_semaphore, #tpu.memory_space<semaphore_mem>> -> memref<1x!tpu.dma_semaphore, #tpu.memory_space<semaphore_mem>>
    %1 = tpu.memref_squeeze %0 : memref<1x!tpu.dma_semaphore, #tpu.memory_space<semaphore_mem>> -> memref<!tpu.dma_semaphore, #tpu.memory_space<semaphore_mem>>
    tpu.enqueue_dma source(%arg0 : memref<2x4x16x16xf32, #tpu.memory_space<any>>) target(%arg1 : memref<2x4x16x16xf32, #tpu.memory_space<any>>) target_semaphore(%1 : memref<!tpu.dma_semaphore, #tpu.memory_space<semaphore_mem>>)
    %c0_i32_0 = arith.constant 0 : i32
    %2 = tpu.memref_slice %arg2[%c0_i32_0] : memref<1x!tpu.dma_semaphore, #tpu.memory_space<semaphore_mem>> -> memref<1x!tpu.dma_semaphore, #tpu.memory_space<semaphore_mem>>
    %3 = tpu.memref_squeeze %2 : memref<1x!tpu.dma_semaphore, #tpu.memory_space<semaphore_mem>> -> memref<!tpu.dma_semaphore, #tpu.memory_space<semaphore_mem>>
    tpu.wait_dma2 semaphore(%3 : memref<!tpu.dma_semaphore, #tpu.memory_space<semaphore_mem>>) src(%arg0 : memref<2x4x16x16xf32, #tpu.memory_space<any>>) dst(%arg1 : memref<2x4x16x16xf32, #tpu.memory_space<any>>)
    return
  }
}

</mosaic_0001>

<llo_original>
// kernel: _pallas_identity_copy.1
$region0: #{_pallas_identity_copy.1}
  #allocation0 [shape = 'u32[]', space=smem, size = 0x4, offset = 0x4, fixed_abs, tag = 'smem constant byte address 0x4 - core index']
  #allocation1 [shape = 'u32[72,128]{1,0:T(1,128)}', space=vmem, size = 0x9000, scoped, tag = 'internal scratch']
  #allocation2 [shape = 's32[1]{0}', space=sflag, size = 0x4, scoped, tag = 'scratch operand']
  #allocation3 [shape = 's32[]', space=sflag, size = 0x4, offset = 0, fixed_abs, tag = 'sflag constant byte address 0x0 - dummy sync flag']
  #allocation4 [shape = 'u32[0]{0}', space=smem, size = 0, offset = 0, fixed_abs, tag = 'smem constant byte address 0x0 - null']
  %s0 = inlined_call_operand.hbm [shape: f32[2,4,16,16], index: 0, kind: input, shape index: {}]
  %s1 = inlined_call_operand.hbm [shape: f32[2,4,16,16], index: 1, kind: output, shape index: {}]
  %s2 = sld [smem:[#allocation0]]
  $region2: #{_pallas_identity_copy.1} parent=0
    _
  %s4 = ssub.s32 1, %s2
  %s5 = scalar_select 0, %s4, %s2
  %s7 = sshll.u32 1, 14
  %s8 = sxor.u32 4294967295, %s7
  %s10 = sshll.u32 %s0, 4
  %s11 = int_to_ptr.hbm [resolvable:$true] %s10
  %s12 = sshll.u32 %s1, 4
  %s13 = int_to_ptr.hbm [resolvable:$true] %s12
  %16 = dma.general %s11, 2048, %s13, [#allocation2], [#allocation3], [#allocation4], 0, 0
  %s17 = smul.u32 2, 4
  %s18 = smul.u32 %s17, 16
  %s19 = smul.u32 %s18, 1
  %s20 = sshll.u32 %s19, 4
  %21 = dma.done [#allocation2], %s20
  %22 = vsyncmov [#allocation2]
  %s23 = vpop.sfrf %22
  %p24 = scmp.eq.s32.totalorder %s23, 0
  %p25 = pneg %p24
  %27 = shalt.err (%p25)

</llo_original>
